<compile_context>
chip_gen: v6e
topology: v6e:2x2x1
jax: 0.10.0
libtpu: 0.0.40
codegen_flags: <defaults>
</compile_context>

<pallas_src>
import functools
import math

import jax
import jax.numpy as jnp
from jax.experimental import pallas as pl
from jax.experimental.pallas import tpu as pltpu


def _round_up(n, m):
    return ((n + m - 1) // m) * m


def _pad2d(a, rows, cols):
    r, c = a.shape
    return jnp.pad(a, ((0, rows - r), (0, cols - c)))


def _fused_graphsage_kernel(x_ref, adj_ref, w1_ref, b1_ref, w2_ref, b2_ref,
                            o_ref, *, nhid_p, nclass_p, nclass, use_relu,
                            compute_dtype):
    x = x_ref[...]        # [Np, Fin_p]   compute_dtype
    adj = adj_ref[...]    # [Np, Np]      compute_dtype

    # ---------------- layer 1 (gc1) ----------------
    # One concatenated matmul: x @ [W1 | W2]  -> [Np, 2*Fh_p], f32 accumulation.
    s = jnp.dot(x, w1_ref[...], preferred_element_type=jnp.float32) + b1_ref[...]
    s1 = s[:, :nhid_p]
    s2 = s[:, nhid_p:]
    h = jnp.dot(adj, s2.astype(compute_dtype),
                preferred_element_type=jnp.float32) + s1
    if use_relu:
        h = jnp.maximum(h, 0.0)           # f32 epilogue (v5e-safe)
    # dropout: identity in eval mode.

    # ---------------- layer 2 (gc2) ----------------
    t = jnp.dot(h.astype(compute_dtype), w2_ref[...],
                preferred_element_type=jnp.float32) + b2_ref[...]
    t1 = t[:, :nclass_p]
    t2 = t[:, nclass_p:]
    logits = jnp.dot(adj, t2.astype(compute_dtype),
                     preferred_element_type=jnp.float32) + t1   # [Np, Fc_p] f32

    # ---------------- masked row-wise log_softmax ----------------
    col = jax.lax.broadcasted_iota(jnp.int32, logits.shape, 1)
    valid = col < nclass
    masked = jnp.where(valid, logits, jnp.full_like(logits, -1e30))
    m = jnp.max(masked, axis=-1, keepdims=True)
    p = jnp.exp(masked - m)                      # padded lanes underflow to 0
    lse = jnp.log(jnp.sum(p, axis=-1, keepdims=True))
    o_ref[...] = ((logits - m) - lse).astype(o_ref.dtype)


def graphsage_forward(x, adj, params, use_relu=True,
                      compute_dtype=jnp.bfloat16):
    """Fused 2-layer GraphSAGE forward.  x: [N, nfeat], adj: [N, N]."""
    (w11, b11, w12, b12), (w21, b21, w22, b22) = params
    N, nfeat = x.shape
    nhid = w11.shape[1]
    nclass = w21.shape[1]

    LANE, SUB = 128, 8
    Np = _round_up(N, SUB)
    Fin_p = _round_up(nfeat, LANE)
    Fh_p = _round_up(nhid, LANE)
    Fc_p = _round_up(nclass, LANE)

    # Pad + cast matmul operands (zero padding is exact for the matmuls).
    x_p = _pad2d(x, Np, Fin_p).astype(compute_dtype)
    adj_p = _pad2d(adj, Np, Np).astype(compute_dtype)
    w1cat = jnp.concatenate(
        [_pad2d(w11, Fin_p, Fh_p), _pad2d(w12, Fin_p, Fh_p)],
        axis=1).astype(compute_dtype)                       # [Fin_p, 2*Fh_p]
    b1cat = jnp.concatenate(
        [_pad2d(b11, 1, Fh_p), _pad2d(b12, 1, Fh_p)],
        axis=1).astype(jnp.float32)                         # [1, 2*Fh_p]
    w2cat = jnp.concatenate(
        [_pad2d(w21, Fh_p, Fc_p), _pad2d(w22, Fh_p, Fc_p)],
        axis=1).astype(compute_dtype)                       # [Fh_p, 2*Fc_p]
    b2cat = jnp.concatenate(
        [_pad2d(b21, 1, Fc_p), _pad2d(b22, 1, Fc_p)],
        axis=1).astype(jnp.float32)                         # [1, 2*Fc_p]

    kernel = functools.partial(
        _fused_graphsage_kernel, nhid_p=Fh_p, nclass_p=Fc_p, nclass=nclass,
        use_relu=use_relu, compute_dtype=compute_dtype)

    # Advisory cost estimate so XLA can schedule/overlap this custom call.
    flops = 2 * Np * (Fin_p * 2 * Fh_p + Np * Fh_p + Fh_p * 2 * Fc_p + Np * Fc_p)
    itm = jnp.dtype(compute_dtype).itemsize
    bytes_accessed = ((Np * Fin_p + Np * Np + Fin_p * 2 * Fh_p
                       + Fh_p * 2 * Fc_p) * itm
                      + (2 * Fh_p + 2 * Fc_p) * 4
                      + Np * Fc_p * 4)
    cost = pl.CostEstimate(flops=int(flops),
                           transcendentals=int(Np * Fc_p + Np),
                           bytes_accessed=int(bytes_accessed))

    out_p = pl.pallas_call(
        kernel,
        out_shape=jax.ShapeDtypeStruct((Np, Fc_p), jnp.float32),
        grid=(1,),
        in_specs=[
            pl.BlockSpec((Np, Fin_p),      lambda i: (0, 0)),   # x
            pl.BlockSpec((Np, Np),         lambda i: (0, 0)),   # adj
            pl.BlockSpec((Fin_p, 2 * Fh_p), lambda i: (0, 0)),  # W1|W2 (gc1)
            pl.BlockSpec((1, 2 * Fh_p),    lambda i: (0, 0)),   # b1|b2 (gc1)
            pl.BlockSpec((Fh_p, 2 * Fc_p), lambda i: (0, 0)),   # W1|W2 (gc2)
            pl.BlockSpec((1, 2 * Fc_p),    lambda i: (0, 0)),   # b1|b2 (gc2)
        ],
        out_specs=pl.BlockSpec((Np, Fc_p), lambda i: (0, 0)),
        compiler_params=pltpu.CompilerParams(
            dimension_semantics=("arbitrary",)),
        cost_estimate=cost,
    )(x_p, adj_p, w1cat, b1cat, w2cat, b2cat)

    return out_p[:N, :nclass]


def init_linear_params(key, in_features, out_features):
    """Matches NewConvolution.init(): weight ~ U(-stdv, stdv), stdv=1/sqrt(in).
    Bias keeps nn.Linear's default U(-1/sqrt(in), 1/sqrt(in)) (same range)."""
    stdv = 1.0 / math.sqrt(in_features)
    kw, kb = jax.random.split(key)
    # stored as [in, out] so the kernel computes x @ W (== x @ W_torch.T)
    w = jax.random.uniform(kw, (in_features, out_features), jnp.float32,
                           minval=-stdv, maxval=stdv)
    b = jax.random.uniform(kb, (1, out_features), jnp.float32,
                           minval=-stdv, maxval=stdv)
    return w, b


def _reference_forward(x, adj, params, use_relu=True,
                       compute_dtype=jnp.bfloat16):
    """Pure-JAX reference with the same bf16-input / f32-accumulate pattern."""
    (w11, b11, w12, b12), (w21, b21, w22, b22) = params
    xc = x.astype(compute_dtype)
    ac = adj.astype(compute_dtype)
    s1 = jnp.dot(xc, w11.astype(compute_dtype),
                 preferred_element_type=jnp.float32) + b11
    s2 = jnp.dot(xc, w12.astype(compute_dtype),
                 preferred_element_type=jnp.float32) + b12
    h = jnp.dot(ac, s2.astype(compute_dtype),
                preferred_element_type=jnp.float32) + s1
    if use_relu:
        h = jnp.maximum(h, 0.0)
    hc = h.astype(compute_dtype)
    t1 = jnp.dot(hc, w21.astype(compute_dtype),
                 preferred_element_type=jnp.float32) + b21
    t2 = jnp.dot(hc, w22.astype(compute_dtype),
                 preferred_element_type=jnp.float32) + b22
    o = jnp.dot(ac, t2.astype(compute_dtype),
                preferred_element_type=jnp.float32) + t1
    return jax.nn.log_softmax(o, axis=1)


if __name__ == "__main__":
    # Small, tile-friendly shapes consistent with the module.
    N, nfeat, nhid, nclass = 128, 64, 32, 16

    key = jax.random.PRNGKey(0)
    kx, kadj, k11, k12, k21, k22 = jax.random.split(key, 6)

    x = jax.random.normal(kx, (N, nfeat), jnp.float32)
    # Dense non-negative adjacency with row normalization (typical aggregation).
    adj_raw = jax.random.uniform(kadj, (N, N), jnp.float32)
    adj = adj_raw / jnp.sum(adj_raw, axis=1, keepdims=True)

    params = (
        (*init_linear_params(k11, nfeat, nhid),
         *init_linear_params(k12, nfeat, nhid)),
        (*init_linear_params(k21, nhid, nclass),
         *init_linear_params(k22, nhid, nclass)),
    )

    out = graphsage_forward(x, adj, params, use_relu=True)
    out = jax.block_until_ready(out)

    ref = _reference_forward(x, adj, params, use_relu=True)
    assert out.shape == (N, nclass)
    # bf16 matmul inputs => looser tolerance than a pure-f32 comparison.
    assert jnp.allclose(out, ref, atol=2e-2, rtol=2e-2), \
        "mismatch vs JAX reference"

    print("KERNEL_OK")
</pallas_src>

<mosaic_0001>
module attributes {stable_mosaic.version = 11 : i64} {
  func.func @_fused_graphsage_kernel(%arg0: i32, %arg1: memref<128x128xbf16, #tpu.memory_space<vmem>>, %arg2: memref<128x128xbf16, #tpu.memory_space<vmem>>, %arg3: memref<128x256xbf16, #tpu.memory_space<vmem>>, %arg4: memref<1x256xf32, #tpu.memory_space<vmem>>, %arg5: memref<128x256xbf16, #tpu.memory_space<vmem>>, %arg6: memref<1x256xf32, #tpu.memory_space<vmem>>, %arg7: memref<128x128xf32, #tpu.memory_space<vmem>>) attributes {dimension_semantics = [#tpu.dimension_semantics<arbitrary>], iteration_bounds = array<i64: 1>, scalar_prefetch = 0 : i64, scratch_operands = 0 : i64, tpu.core_type = #tpu.core_type<tc>, window_params = [{pipeline_mode = #tpu.pipeline_mode<synchronous>, transform_indices = @transform_0, window_bounds = array<i64: 128, 128>}, {pipeline_mode = #tpu.pipeline_mode<synchronous>, transform_indices = @transform_1, window_bounds = array<i64: 128, 128>}, {pipeline_mode = #tpu.pipeline_mode<synchronous>, transform_indices = @transform_2, window_bounds = array<i64: 128, 256>}, {pipeline_mode = #tpu.pipeline_mode<synchronous>, transform_indices = @transform_3, window_bounds = array<i64: 1, 256>}, {pipeline_mode = #tpu.pipeline_mode<synchronous>, transform_indices = @transform_4, window_bounds = array<i64: 128, 256>}, {pipeline_mode = #tpu.pipeline_mode<synchronous>, transform_indices = @transform_5, window_bounds = array<i64: 1, 256>}, {pipeline_mode = #tpu.pipeline_mode<synchronous>, transform_indices = @transform_6, window_bounds = array<i64: 128, 128>}]} {
    %c0 = arith.constant 0 : index
    %c0_0 = arith.constant 0 : index
    %0 = vector.load %arg1[%c0, %c0_0] : memref<128x128xbf16, #tpu.memory_space<vmem>>, vector<128x128xbf16>
    %c0_1 = arith.constant 0 : index
    %c0_2 = arith.constant 0 : index
    %1 = vector.load %arg2[%c0_1, %c0_2] : memref<128x128xbf16, #tpu.memory_space<vmem>>, vector<128x128xbf16>
    %c0_3 = arith.constant 0 : index
    %c0_4 = arith.constant 0 : index
    %2 = vector.load %arg3[%c0_3, %c0_4] : memref<128x256xbf16, #tpu.memory_space<vmem>>, vector<128x256xbf16>
    %cst = arith.constant dense<0.000000e+00> : vector<128x256xf32>
    %3 = tpu.matmul %0, %2, %cst {dimension_numbers = #tpu.dot_dimension_numbers<[1], [0], [0], [1], [0, 0, 1, 1], [], []>} : vector<128x128xbf16>, vector<128x256xbf16>, vector<128x256xf32> -> vector<128x256xf32>
    %c0_5 = arith.constant 0 : index
    %c0_6 = arith.constant 0 : index
    %4 = vector.load %arg4[%c0_5, %c0_6] : memref<1x256xf32, #tpu.memory_space<vmem>>, vector<1x256xf32>
    %5 = vector.broadcast %4 : vector<1x256xf32> to vector<128x256xf32>
    %6 = arith.addf %3, %5 : vector<128x256xf32>
    %7 = vector.extract_strided_slice %6 {offsets = [0, 0], sizes = [128, 128], strides = [1, 1]} : vector<128x256xf32> to vector<128x128xf32>
    %8 = vector.extract_strided_slice %6 {offsets = [0, 128], sizes = [128, 128], strides = [1, 1]} : vector<128x256xf32> to vector<128x128xf32>
    %9 = arith.truncf %8 : vector<128x128xf32> to vector<128x128xbf16>
    %cst_7 = arith.constant dense<0.000000e+00> : vector<128x128xf32>
    %10 = tpu.matmul %1, %9, %cst_7 {dimension_numbers = #tpu.dot_dimension_numbers<[1], [0], [0], [1], [0, 0, 1, 1], [], []>} : vector<128x128xbf16>, vector<128x128xbf16>, vector<128x128xf32> -> vector<128x128xf32>
    %11 = arith.addf %10, %7 : vector<128x128xf32>
    %cst_8 = arith.constant 0.000000e+00 : f32
    %12 = vector.broadcast %cst_8 : f32 to vector<128x128xf32>
    %13 = arith.maximumf %11, %12 : vector<128x128xf32>
    %14 = arith.truncf %13 : vector<128x128xf32> to vector<128x128xbf16>
    %c0_9 = arith.constant 0 : index
    %c0_10 = arith.constant 0 : index
    %15 = vector.load %arg5[%c0_9, %c0_10] : memref<128x256xbf16, #tpu.memory_space<vmem>>, vector<128x256xbf16>
    %cst_11 = arith.constant dense<0.000000e+00> : vector<128x256xf32>
    %16 = tpu.matmul %14, %15, %cst_11 {dimension_numbers = #tpu.dot_dimension_numbers<[1], [0], [0], [1], [0, 0, 1, 1], [], []>} : vector<128x128xbf16>, vector<128x256xbf16>, vector<128x256xf32> -> vector<128x256xf32>
    %c0_12 = arith.constant 0 : index
    %c0_13 = arith.constant 0 : index
    %17 = vector.load %arg6[%c0_12, %c0_13] : memref<1x256xf32, #tpu.memory_space<vmem>>, vector<1x256xf32>
    %18 = vector.broadcast %17 : vector<1x256xf32> to vector<128x256xf32>
    %19 = arith.addf %16, %18 : vector<128x256xf32>
    %20 = vector.extract_strided_slice %19 {offsets = [0, 0], sizes = [128, 128], strides = [1, 1]} : vector<128x256xf32> to vector<128x128xf32>
    %21 = vector.extract_strided_slice %19 {offsets = [0, 128], sizes = [128, 128], strides = [1, 1]} : vector<128x256xf32> to vector<128x128xf32>
    %22 = arith.truncf %21 : vector<128x128xf32> to vector<128x128xbf16>
    %cst_14 = arith.constant dense<0.000000e+00> : vector<128x128xf32>
    %23 = tpu.matmul %1, %22, %cst_14 {dimension_numbers = #tpu.dot_dimension_numbers<[1], [0], [0], [1], [0, 0, 1, 1], [], []>} : vector<128x128xbf16>, vector<128x128xbf16>, vector<128x128xf32> -> vector<128x128xf32>
    %24 = arith.addf %23, %20 : vector<128x128xf32>
    %25 = tpu.iota {dimensions = array<i32: 1>} : vector<128x128xi32>
    %c16_i32 = arith.constant 16 : i32
    %26 = vector.broadcast %c16_i32 : i32 to vector<128x128xi32>
    %27 = arith.cmpi slt, %25, %26 : vector<128x128xi32>
    %cst_15 = arith.constant -1.000000e+30 : f32
    %28 = vector.broadcast %cst_15 : f32 to vector<128x128xf32>
    %29 = arith.select %27, %24, %28 : vector<128x128xi1>, vector<128x128xf32>
    %cst_16 = arith.constant dense<0xFF800000> : vector<128xf32>
    %30 = vector.multi_reduction <maximumf>, %29, %cst_16 [1] : vector<128x128xf32> to vector<128xf32>
    %31 = vector.shape_cast %30 : vector<128xf32> to vector<128x1xf32>
    %32 = vector.broadcast %31 : vector<128x1xf32> to vector<128x128xf32>
    %33 = arith.subf %29, %32 : vector<128x128xf32>
    %34 = math.exp %33 : vector<128x128xf32>
    %cst_17 = arith.constant dense<0.000000e+00> : vector<128xf32>
    %35 = vector.multi_reduction <add>, %34, %cst_17 [1] : vector<128x128xf32> to vector<128xf32>
    %36 = vector.shape_cast %35 : vector<128xf32> to vector<128x1xf32>
    %37 = math.log %36 : vector<128x1xf32>
    %38 = vector.broadcast %31 : vector<128x1xf32> to vector<128x128xf32>
    %39 = arith.subf %24, %38 : vector<128x128xf32>
    %40 = vector.broadcast %37 : vector<128x1xf32> to vector<128x128xf32>
    %41 = arith.subf %39, %40 : vector<128x128xf32>
    %c0_18 = arith.constant 0 : index
    %c0_19 = arith.constant 0 : index
    %42 = vector.load %arg7[%c0_18, %c0_19] : memref<128x128xf32, #tpu.memory_space<vmem>>, vector<128x128xf32>
    tpu.vector_store %arg7[%c0_18, %c0_19], %41 {strides = array<i32>} : memref<128x128xf32, #tpu.memory_space<vmem>>, vector<128x128xf32>,
    return
  }
  func.func @transform_0(%arg0: i32) -> (i32, i32) {
    %c0_i32 = arith.constant 0 : i32
    %c0_i32_0 = arith.constant 0 : i32
    %c0_i32_1 = arith.constant 0 : i32
    return %c0_i32, %c0_i32_0 : i32, i32
  }
  func.func @transform_1(%arg0: i32) -> (i32, i32) {
    %c0_i32 = arith.constant 0 : i32
    %c0_i32_0 = arith.constant 0 : i32
    %c0_i32_1 = arith.constant 0 : i32
    return %c0_i32, %c0_i32_0 : i32, i32
  }
  func.func @transform_2(%arg0: i32) -> (i32, i32) {
    %c0_i32 = arith.constant 0 : i32
    %c0_i32_0 = arith.constant 0 : i32
    %c0_i32_1 = arith.constant 0 : i32
    return %c0_i32, %c0_i32_0 : i32, i32
  }
  func.func @transform_3(%arg0: i32) -> (i32, i32) {
    %c0_i32 = arith.constant 0 : i32
    %c0_i32_0 = arith.constant 0 : i32
    %c0_i32_1 = arith.constant 0 : i32
    return %c0_i32, %c0_i32_0 : i32, i32
  }
  func.func @transform_4(%arg0: i32) -> (i32, i32) {
    %c0_i32 = arith.constant 0 : i32
    %c0_i32_0 = arith.constant 0 : i32
    %c0_i32_1 = arith.constant 0 : i32
    return %c0_i32, %c0_i32_0 : i32, i32
  }
  func.func @transform_5(%arg0: i32) -> (i32, i32) {
    %c0_i32 = arith.constant 0 : i32
    %c0_i32_0 = arith.constant 0 : i32
    %c0_i32_1 = arith.constant 0 : i32
    return %c0_i32, %c0_i32_0 : i32, i32
  }
  func.func @transform_6(%arg0: i32) -> (i32, i32) {
    %c0_i32 = arith.constant 0 : i32
    %c0_i32_0 = arith.constant 0 : i32
    %c0_i32_1 = arith.constant 0 : i32
    return %c0_i32, %c0_i32_0 : i32, i32
  }
}

</mosaic_0001>

<llo_original>
// kernel: tpu_custom_call.1
$region0: #{tpu_custom_call.1}
  #allocation0 [shape = 'u32[]', space=smem, size = 0x4, offset = 0x4, fixed_abs, tag = 'smem constant byte address 0x4 - core index']
  #allocation1 [shape = 'u32[144,128]{1,0:T(1,128)}', space=vmem, size = 0x12000, scoped, tag = 'internal scratch']
  %s0 = inlined_call_operand.hbm [shape: bf16[128,128], index: 0, kind: input, shape index: {}]
  %s1 = inlined_call_operand.hbm [shape: bf16[128,128], index: 1, kind: input, shape index: {}]
  %s2 = inlined_call_operand.hbm [shape: bf16[128,256], index: 2, kind: input, shape index: {}]
  %s3 = inlined_call_operand.vmem [shape: f32[1,256], index: 3, kind: input, shape index: {}]
  %s4 = inlined_call_operand.hbm [shape: bf16[128,256], index: 4, kind: input, shape index: {}]
  %s5 = inlined_call_operand.vmem [shape: f32[1,256], index: 5, kind: input, shape index: {}]
  %s6 = inlined_call_operand.hbm [shape: f32[128,128], index: 6, kind: output, shape index: {}]
  %s7 = sld [smem:[#allocation0]]
  $region50: #{tpu_custom_call.1} parent=0
    _
  %s9 = ssub.s32 1, %s7
  %s10 = scalar_select 0, %s9, %s7
  $region1: #{tpu_custom_call.1} parent=0
    #allocation2 [shape = 'u8[32768]{0}', space=vmem, size = 0x8000, scoped, tag = 'input window, operand 0, single buffered']
    #allocation3 [shape = 's32[1]{0}', space=sflag, size = 0x4, scoped, tag = 'scoped memory for tpu_custom_call.1']
    #allocation4 [shape = 's32[1]{0}', space=sflag, size = 0x4, scoped, tag = 'scoped memory for tpu_custom_call.1']
    #allocation5 [shape = 'u8[32768]{0}', space=vmem, size = 0x8000, scoped, tag = 'input window, operand 1, single buffered']
    #allocation6 [shape = 's32[1]{0}', space=sflag, size = 0x4, scoped, tag = 'scoped memory for tpu_custom_call.1']
    #allocation7 [shape = 'u8[65536]{0}', space=vmem, size = 0x10000, scoped, tag = 'input window, operand 2, single buffered']
    #allocation8 [shape = 'u8[65536]{0}', space=vmem, size = 0x10000, scoped, tag = 'input window, operand 4, single buffered']
    #allocation9 [shape = 's32[1]{0}', space=sflag, size = 0x4, scoped, tag = 'scoped memory for tpu_custom_call.1']
    #allocation10 [shape = 'u8[65536]{0}', space=vmem, size = 0x10000, scoped, tag = 'output window, operand 0, single buffered']
    %11 = vsyncpa [#allocation3], 0
    %12 = vsyncpa [#allocation6], 0
    %13 = vsyncpa [#allocation9], 0
    %14 = vsyncpa [#allocation4], 0
    // Predicated region
    $region2: #{tpu_custom_call.1} parent=1 // pred_check
      _
    $region3: #{tpu_custom_call.1} parent=1 // pred_check_branch
      %16 = sbr.rel (0) target = $region5
    $region4: #{tpu_custom_call.1} parent=1 // pred_region
      %s18 = ssub.s32 1024, 1024
      %19 = vsyncadd [#allocation3], %s18
      %s20 = sshll.u32 [#allocation2], 4
      %s21 = int_to_ptr.vmem [resolvable:$true] %s20
      %26 = dma.hbm_to_vmem [thread:$0]  %s0, 1024, %s21, [#allocation3], 64, 64, 4
    $region5: #{tpu_custom_call.1} parent=1 // pred_fallthru
      _
    // Predicated region
    $region6: #{tpu_custom_call.1} parent=1 // pred_check
      _
    $region7: #{tpu_custom_call.1} parent=1 // pred_check_branch
      %28 = sbr.rel (0) target = $region9
    $region8: #{tpu_custom_call.1} parent=1 // pred_region
      %s30 = ssub.s32 1024, 1024
      %31 = vsyncadd [#allocation6], %s30
      %s32 = sshll.u32 [#allocation5], 4
      %s33 = int_to_ptr.vmem [resolvable:$true] %s32
      %38 = dma.hbm_to_vmem [thread:$0]  %s1, 1024, %s33, [#allocation6], 64, 64, 4
    $region9: #{tpu_custom_call.1} parent=1 // pred_fallthru
      _
    // Predicated region
    $region10: #{tpu_custom_call.1} parent=1 // pred_check
      _
    $region11: #{tpu_custom_call.1} parent=1 // pred_check_branch
      %40 = sbr.rel (0) target = $region13
    $region12: #{tpu_custom_call.1} parent=1 // pred_region
      %s42 = ssub.s32 2048, 2048
      %43 = vsyncadd [#allocation6], %s42
      %s44 = sshll.u32 [#allocation7], 4
      %s45 = int_to_ptr.vmem [resolvable:$true] %s44
      %50 = dma.hbm_to_vmem [thread:$0]  %s2, 2048, %s45, [#allocation6], 128, 128, 8
    $region13: #{tpu_custom_call.1} parent=1 // pred_fallthru
      _
    // Predicated region
    $region14: #{tpu_custom_call.1} parent=1 // pred_check
      _
    $region15: #{tpu_custom_call.1} parent=1 // pred_check_branch
      %52 = sbr.rel (0) target = $region17
    $region16: #{tpu_custom_call.1} parent=1 // pred_region
      _
    $region17: #{tpu_custom_call.1} parent=1 // pred_fallthru
      _
    // Predicated region
    $region18: #{tpu_custom_call.1} parent=1 // pred_check
      _
    $region19: #{tpu_custom_call.1} parent=1 // pred_check_branch
      %54 = sbr.rel (0) target = $region21
    $region20: #{tpu_custom_call.1} parent=1 // pred_region
      %s56 = ssub.s32 2048, 2048
      %57 = vsyncadd [#allocation9], %s56
      %s58 = sshll.u32 [#allocation8], 4
      %s59 = int_to_ptr.vmem [resolvable:$true] %s58
      %64 = dma.hbm_to_vmem [thread:$0]  %s4, 2048, %s59, [#allocation9], 128, 128, 8
    $region21: #{tpu_custom_call.1} parent=1 // pred_fallthru
      _
    // Predicated region
    $region22: #{tpu_custom_call.1} parent=1 // pred_check
      _
    $region23: #{tpu_custom_call.1} parent=1 // pred_check_branch
      %66 = sbr.rel (0) target = $region25
    $region24: #{tpu_custom_call.1} parent=1 // pred_region
      _
    $region25: #{tpu_custom_call.1} parent=1 // pred_fallthru
      _
    // Predicated region
    $region26: #{tpu_custom_call.1} parent=1 // pred_check
      _
    $region27: #{tpu_custom_call.1} parent=1 // pred_check_branch
      %68 = sbr.rel (0) target = $region29
    $region28: #{tpu_custom_call.1} parent=1 // pred_region
      %69 = dma.done [#allocation3], 1024
    $region29: #{tpu_custom_call.1} parent=1 // pred_fallthru
      _
    // Predicated region
    $region30: #{tpu_custom_call.1} parent=1 // pred_check
      _
    $region31: #{tpu_custom_call.1} parent=1 // pred_check_branch
      %71 = sbr.rel (0) target = $region33
    $region32: #{tpu_custom_call.1} parent=1 // pred_region
      %72 = dma.done [#allocation6], 1024
    $region33: #{tpu_custom_call.1} parent=1 // pred_fallthru
      _
    // Predicated region
    $region34: #{tpu_custom_call.1} parent=1 // pred_check
      _
    $region35: #{tpu_custom_call.1} parent=1 // pred_check_branch
      %74 = sbr.rel (0) target = $region37
    $region36: #{tpu_custom_call.1} parent=1 // pred_region
      %75 = dma.done [#allocation6], 2048
    $region37: #{tpu_custom_call.1} parent=1 // pred_fallthru
      _
    // Predicated region
    $region38: #{tpu_custom_call.1} parent=1 // pred_check
      _
    $region39: #{tpu_custom_call.1} parent=1 // pred_check_branch
      %77 = sbr.rel (0) target = $region41
    $region40: #{tpu_custom_call.1} parent=1 // pred_region
      %78 = dma.done [#allocation9], 2048
    $region41: #{tpu_custom_call.1} parent=1 // pred_fallthru
      _
    %v80 = vld [vmem:[#allocation2] sm:$0xf]
    %v81 = vld [vmem:[#allocation2 + $0x4] sm:$0xf]
    %v82 = vld [vmem:[#allocation2 + $0x8] sm:$0xf]
    %v83 = vld [vmem:[#allocation2 + $0xc] sm:$0xf]
    %v84 = vld [vmem:[#allocation2 + $0x10] sm:$0xf]
    %v85 = vld [vmem:[#allocation2 + $0x14] sm:$0xf]
    %v86 = vld [vmem:[#allocation2 + $0x18] sm:$0xf]
    %v87 = vld [vmem:[#allocation2 + $0x1c] sm:$0xf]
    %v88 = vld [vmem:[#allocation2 + $0x20] sm:$0xf]
    %v89 = vld [vmem:[#allocation2 + $0x24] sm:$0xf]
    %v90 = vld [vmem:[#allocation2 + $0x28] sm:$0xf]
    %v91 = vld [vmem:[#allocation2 + $0x2c] sm:$0xf]
    %v92 = vld [vmem:[#allocation2 + $0x30] sm:$0xf]
    %v93 = vld [vmem:[#allocation2 + $0x34] sm:$0xf]
    %v94 = vld [vmem:[#allocation2 + $0x38] sm:$0xf]
    %v95 = vld [vmem:[#allocation2 + $0x3c] sm:$0xf]
    %v96 = vld [vmem:[#allocation5] sm:$0xf]
    %v97 = vld [vmem:[#allocation5 + $0x4] sm:$0xf]
    %v98 = vld [vmem:[#allocation5 + $0x8] sm:$0xf]
    %v99 = vld [vmem:[#allocation5 + $0xc] sm:$0xf]
    %v100 = vld [vmem:[#allocation5 + $0x10] sm:$0xf]
    %v101 = vld [vmem:[#allocation5 + $0x14] sm:$0xf]
    %v102 = vld [vmem:[#allocation5 + $0x18] sm:$0xf]
    %v103 = vld [vmem:[#allocation5 + $0x1c] sm:$0xf]
    %v104 = vld [vmem:[#allocation5 + $0x20] sm:$0xf]
    %v105 = vld [vmem:[#allocation5 + $0x24] sm:$0xf]
    %v106 = vld [vmem:[#allocation5 + $0x28] sm:$0xf]
    %v107 = vld [vmem:[#allocation5 + $0x2c] sm:$0xf]
    %v108 = vld [vmem:[#allocation5 + $0x30] sm:$0xf]
    %v109 = vld [vmem:[#allocation5 + $0x34] sm:$0xf]
    %v110 = vld [vmem:[#allocation5 + $0x38] sm:$0xf]
    %v111 = vld [vmem:[#allocation5 + $0x3c] sm:$0xf]
    %v112 = vld [vmem:[#allocation7] sm:$0xff]
    %v113 = vld [vmem:[#allocation7 + $0x8] sm:$0xff]
    %v114 = vld [vmem:[#allocation7 + $0x10] sm:$0xff]
    %v115 = vld [vmem:[#allocation7 + $0x18] sm:$0xff]
    %v116 = vld [vmem:[#allocation7 + $0x20] sm:$0xff]
    %v117 = vld [vmem:[#allocation7 + $0x28] sm:$0xff]
    %v118 = vld [vmem:[#allocation7 + $0x30] sm:$0xff]
    %v119 = vld [vmem:[#allocation7 + $0x38] sm:$0xff]
    %v120 = vld [vmem:[#allocation7 + $0x40] sm:$0xff]
    %v121 = vld [vmem:[#allocation7 + $0x48] sm:$0xff]
    %v122 = vld [vmem:[#allocation7 + $0x50] sm:$0xff]
    %v123 = vld [vmem:[#allocation7 + $0x58] sm:$0xff]
    %v124 = vld [vmem:[#allocation7 + $0x60] sm:$0xff]
    %v125 = vld [vmem:[#allocation7 + $0x68] sm:$0xff]
    %v126 = vld [vmem:[#allocation7 + $0x70] sm:$0xff]
    %v127 = vld [vmem:[#allocation7 + $0x78] sm:$0xff]
    %v128 = vld [vmem:[%s3] sm:$0x3]
    %v130 = vlaneseq
    %v131 = vshrl.u32 %v130, 7
    %v132 = vsub.s32 0, %v131
    %v133 = vrot.slane %v128, %v132
    %v134 = vlaneseq
    %v135 = vshrl.u32 %v134, 7
    %v136 = vsub.s32 1, %v135
    %v137 = vrot.slane %v128, %v136
    %v156 = vunpack.c.l.b16 %v80
    %v157 = vunpack.c.l.b16 %v81
    %v158 = vunpack.c.l.b16 %v82
    %v159 = vunpack.c.l.b16 %v83
    %v160 = vunpack.c.l.b16 %v84
    %v161 = vunpack.c.l.b16 %v85
    %v162 = vunpack.c.l.b16 %v86
    %v163 = vunpack.c.l.b16 %v87
    %v164 = vunpack.c.l.b16 %v88
    %v165 = vunpack.c.l.b16 %v89
    %v166 = vunpack.c.l.b16 %v90
    %v167 = vunpack.c.l.b16 %v91
    %v168 = vunpack.c.l.b16 %v92
    %v169 = vunpack.c.l.b16 %v93
    %v170 = vunpack.c.l.b16 %v94
    %v171 = vunpack.c.l.b16 %v95
    %v172 = vpack.c.b16 %v157, %v156
    %v173 = vpack.c.b16 %v159, %v158
    %v174 = vpack.c.b16 %v161, %v160
    %v175 = vpack.c.b16 %v163, %v162
    %v176 = vpack.c.b16 %v165, %v164
    %v177 = vpack.c.b16 %v167, %v166
    %v178 = vpack.c.b16 %v169, %v168
    %v179 = vpack.c.b16 %v171, %v170
    %v204 = vunpack.c.l.b16 %v112
    %v205 = vunpack.c.h.b16 %v112
    %v206 = vunpack.c.l.b16 %v113
    %v207 = vunpack.c.h.b16 %v113
    %v208 = vunpack.c.l.b16 %v114
    %v209 = vunpack.c.h.b16 %v114
    %v210 = vunpack.c.l.b16 %v115
    %v211 = vunpack.c.h.b16 %v115
    %v212 = vunpack.c.l.b16 %v116
    %v213 = vunpack.c.h.b16 %v116
    %v214 = vunpack.c.l.b16 %v117
    %v215 = vunpack.c.h.b16 %v117
    %v216 = vunpack.c.l.b16 %v118
    %v217 = vunpack.c.h.b16 %v118
    %v218 = vunpack.c.l.b16 %v119
    %v219 = vunpack.c.h.b16 %v119
    %v220 = vunpack.c.l.b16 %v120
    %v221 = vunpack.c.h.b16 %v120
    %v222 = vunpack.c.l.b16 %v121
    %v223 = vunpack.c.h.b16 %v121
    %v224 = vunpack.c.l.b16 %v122
    %v225 = vunpack.c.h.b16 %v122
    %v226 = vunpack.c.l.b16 %v123
    %v227 = vunpack.c.h.b16 %v123
    %v228 = vunpack.c.l.b16 %v124
    %v229 = vunpack.c.h.b16 %v124
    %v230 = vunpack.c.l.b16 %v125
    %v231 = vunpack.c.h.b16 %v125
    %v232 = vunpack.c.l.b16 %v126
    %v233 = vunpack.c.h.b16 %v126
    %v234 = vunpack.c.l.b16 %v127
    %v235 = vunpack.c.h.b16 %v127
    %v236 = vpack.c.b16 %v206, %v204
    %v237 = vpack.c.b16 %v207, %v205
    %v238 = vpack.c.b16 %v210, %v208
    %v239 = vpack.c.b16 %v211, %v209
    %v240 = vpack.c.b16 %v214, %v212
    %v241 = vpack.c.b16 %v215, %v213
    %v242 = vpack.c.b16 %v218, %v216
    %v243 = vpack.c.b16 %v219, %v217
    %v244 = vpack.c.b16 %v222, %v220
    %v245 = vpack.c.b16 %v223, %v221
    %v246 = vpack.c.b16 %v226, %v224
    %v247 = vpack.c.b16 %v227, %v225
    %v248 = vpack.c.b16 %v230, %v228
    %v249 = vpack.c.b16 %v231, %v229
    %v250 = vpack.c.b16 %v234, %v232
    %v251 = vpack.c.b16 %v235, %v233
    %268 = vmatprep.subr.bf16.mxu0 %v251
    %269 = vmatpush1.bf16.msra.mxu0 %v250
    %270 = vmatprep.subr.bf16.mxu0 %v249
    %271 = vmatpush1.bf16.msra.mxu0 %v248
    %272 = vmatprep.subr.bf16.mxu0 %v247
    %273 = vmatpush1.bf16.msra.mxu0 %v246
    %274 = vmatprep.subr.bf16.mxu0 %v245
    %275 = vmatpush1.bf16.msra.mxu0 %v244
    %276 = vmatprep.subr.bf16.mxu0 %v243
    %277 = vmatpush1.bf16.msra.mxu0 %v242
    %278 = vmatprep.subr.bf16.mxu0 %v241
    %279 = vmatpush1.bf16.msra.mxu0 %v240
    %280 = vmatprep.subr.bf16.mxu0 %v239
    %281 = vmatpush1.bf16.msra.mxu0 %v238
    %282 = vmatprep.subr.bf16.mxu0 %v237
    %283 = vmatpush1.bf16.msra.mxu0 %v236
    %284 = vmatprep.subr.bf16.mxu0 0
    %285 = vmatpush2.bf16.msra.mxu0 0
    %286 = vmatprep.subr.bf16.mxu0 0
    %287 = vmatpush2.bf16.msra.mxu0 0
    %288 = vmatprep.subr.bf16.mxu0 0
    %289 = vmatpush2.bf16.msra.mxu0 0
    %290 = vmatprep.subr.bf16.mxu0 0
    %291 = vmatpush2.bf16.msra.mxu0 0
    %292 = vmatprep.subr.bf16.mxu0 0
    %293 = vmatpush2.bf16.msra.mxu0 0
    %294 = vmatprep.subr.bf16.mxu0 0
    %295 = vmatpush2.bf16.msra.mxu0 0
    %296 = vmatprep.subr.bf16.mxu0 0
    %297 = vmatpush2.bf16.msra.mxu0 0
    %298 = vmatprep.subr.bf16.mxu0 0
    %299 = vmatpush2.bf16.msra.mxu0 0
    %300 = vmatprep.mubr.bf16.mxu0 0
    %301 = vmatmul.mubr.bf16.gmra.mxu0 %v172
    %v302 = vpop.f32.mrf.mxu0
    %v303 = vadd.f32 %v133, %v302
    %v304 = vpop.f32.mrf.mxu0
    %v305 = vadd.f32 %v137, %v304
    %v306 = vpop.f32.mrf.mxu0
    %v307 = vadd.f32 %v133, %v306
    %v308 = vpop.f32.mrf.mxu0
    %v309 = vadd.f32 %v137, %v308
    %310 = vmatprep.mubr.bf16.mxu0 0
    %311 = vmatmul.mubr.bf16.gmra.mxu0 %v173
    %v312 = vpop.f32.mrf.mxu0
    %v313 = vadd.f32 %v133, %v312
    %v314 = vpop.f32.mrf.mxu0
    %v315 = vadd.f32 %v137, %v314
    %v316 = vpop.f32.mrf.mxu0
    %v317 = vadd.f32 %v133, %v316
    %v318 = vpop.f32.mrf.mxu0
    %v319 = vadd.f32 %v137, %v318
    %320 = vmatprep.mubr.bf16.mxu0 0
    %321 = vmatmul.mubr.bf16.gmra.mxu0 %v174
    %v322 = vpop.f32.mrf.mxu0
    %v323 = vadd.f32 %v133, %v322
    %v324 = vpop.f32.mrf.mxu0
    %v325 = vadd.f32 %v137, %v324
    %v326 = vpop.f32.mrf.mxu0
    %v327 = vadd.f32 %v133, %v326
    %v328 = vpop.f32.mrf.mxu0
    %v329 = vadd.f32 %v137, %v328
    %330 = vmatprep.mubr.bf16.mxu0 0
    %331 = vmatmul.mubr.bf16.gmra.mxu0 %v175
    %v332 = vpop.f32.mrf.mxu0
    %v333 = vadd.f32 %v133, %v332
    %v334 = vpop.f32.mrf.mxu0
    %v335 = vadd.f32 %v137, %v334
    %v336 = vpop.f32.mrf.mxu0
    %v337 = vadd.f32 %v133, %v336
    %v338 = vpop.f32.mrf.mxu0
    %v339 = vadd.f32 %v137, %v338
    %340 = vmatprep.mubr.bf16.mxu0 0
    %341 = vmatmul.mubr.bf16.gmra.mxu0 %v176
    %v342 = vpop.f32.mrf.mxu0
    %v343 = vadd.f32 %v133, %v342
    %v344 = vpop.f32.mrf.mxu0
    %v345 = vadd.f32 %v137, %v344
    %v346 = vpop.f32.mrf.mxu0
    %v347 = vadd.f32 %v133, %v346
    %v348 = vpop.f32.mrf.mxu0
    %v349 = vadd.f32 %v137, %v348
    %350 = vmatprep.mubr.bf16.mxu0 0
    %351 = vmatmul.mubr.bf16.gmra.mxu0 %v177
    %v352 = vpop.f32.mrf.mxu0
    %v353 = vadd.f32 %v133, %v352
    %v354 = vpop.f32.mrf.mxu0
    %v355 = vadd.f32 %v137, %v354
    %v356 = vpop.f32.mrf.mxu0
    %v357 = vadd.f32 %v133, %v356
    %v358 = vpop.f32.mrf.mxu0
    %v359 = vadd.f32 %v137, %v358
    %360 = vmatprep.mubr.bf16.mxu0 0
    %361 = vmatmul.mubr.bf16.gmra.mxu0 %v178
    %v362 = vpop.f32.mrf.mxu0
    %v363 = vadd.f32 %v133, %v362
    %v364 = vpop.f32.mrf.mxu0
    %v365 = vadd.f32 %v137, %v364
    %v366 = vpop.f32.mrf.mxu0
    %v367 = vadd.f32 %v133, %v366
    %v368 = vpop.f32.mrf.mxu0
    %v369 = vadd.f32 %v137, %v368
    %370 = vmatprep.mubr.bf16.mxu0 0
    %371 = vmatmul.mubr.bf16.gmra.mxu0 %v179
    %v372 = vpop.f32.mrf.mxu0
    %v373 = vadd.f32 %v133, %v372
    %v374 = vpop.f32.mrf.mxu0
    %v375 = vadd.f32 %v137, %v374
    %v376 = vpop.f32.mrf.mxu0
    %v377 = vadd.f32 %v133, %v376
    %v378 = vpop.f32.mrf.mxu0
    %v379 = vadd.f32 %v137, %v378
    %380 = vdwg.mxu0
    %v381 = vpack.c.bf16 %v309, %v305
    %v382 = vpack.c.bf16 %v319, %v315
    %v383 = vpack.c.bf16 %v329, %v325
    %v384 = vpack.c.bf16 %v339, %v335
    %v385 = vpack.c.bf16 %v349, %v345
    %v386 = vpack.c.bf16 %v359, %v355
    %v387 = vpack.c.bf16 %v369, %v365
    %v388 = vpack.c.bf16 %v379, %v375
    %v405 = vunpack.c.l.b16 %v96
    %v406 = vunpack.c.l.b16 %v97
    %v407 = vunpack.c.l.b16 %v98
    %v408 = vunpack.c.l.b16 %v99
    %v409 = vunpack.c.l.b16 %v100
    %v410 = vunpack.c.l.b16 %v101
    %v411 = vunpack.c.l.b16 %v102
    %v412 = vunpack.c.l.b16 %v103
    %v413 = vunpack.c.l.b16 %v104
    %v414 = vunpack.c.l.b16 %v105
    %v415 = vunpack.c.l.b16 %v106
    %v416 = vunpack.c.l.b16 %v107
    %v417 = vunpack.c.l.b16 %v108
    %v418 = vunpack.c.l.b16 %v109
    %v419 = vunpack.c.l.b16 %v110
    %v420 = vunpack.c.l.b16 %v111
    %v421 = vpack.c.b16 %v406, %v405
    %v422 = vpack.c.b16 %v408, %v407
    %v423 = vpack.c.b16 %v410, %v409
    %v424 = vpack.c.b16 %v412, %v411
    %v425 = vpack.c.b16 %v414, %v413
    %v426 = vpack.c.b16 %v416, %v415
    %v427 = vpack.c.b16 %v418, %v417
    %v428 = vpack.c.b16 %v420, %v419
    %437 = vmatprep.subr.bf16.mxu0 0
    %438 = vmatpush1.bf16.msra.mxu0 %v388
    %439 = vmatprep.subr.bf16.mxu0 0
    %440 = vmatpush1.bf16.msra.mxu0 %v387
    %441 = vmatprep.subr.bf16.mxu0 0
    %442 = vmatpush1.bf16.msra.mxu0 %v386
    %443 = vmatprep.subr.bf16.mxu0 0
    %444 = vmatpush1.bf16.msra.mxu0 %v385
    %445 = vmatprep.subr.bf16.mxu0 0
    %446 = vmatpush1.bf16.msra.mxu0 %v384
    %447 = vmatprep.subr.bf16.mxu0 0
    %448 = vmatpush1.bf16.msra.mxu0 %v383
    %449 = vmatprep.subr.bf16.mxu0 0
    %450 = vmatpush1.bf16.msra.mxu0 %v382
    %451 = vmatprep.subr.bf16.mxu0 0
    %452 = vmatpush1.bf16.msra.mxu0 %v381
    %453 = vmatprep.subr.bf16.mxu0 0
    %454 = vmatpush2.bf16.msra.mxu0 0
    %455 = vmatprep.subr.bf16.mxu0 0
    %456 = vmatpush2.bf16.msra.mxu0 0
    %457 = vmatprep.subr.bf16.mxu0 0
    %458 = vmatpush2.bf16.msra.mxu0 0
    %459 = vmatprep.subr.bf16.mxu0 0
    %460 = vmatpush2.bf16.msra.mxu0 0
    %461 = vmatprep.subr.bf16.mxu0 0
    %462 = vmatpush2.bf16.msra.mxu0 0
    %463 = vmatprep.subr.bf16.mxu0 0
    %464 = vmatpush2.bf16.msra.mxu0 0
    %465 = vmatprep.subr.bf16.mxu0 0
    %466 = vmatpush2.bf16.msra.mxu0 0
    %467 = vmatprep.subr.bf16.mxu0 0
    %468 = vmatpush2.bf16.msra.mxu0 0
    %469 = vmatprep.mubr.bf16.mxu0 0
    %470 = vmatmul.mubr.bf16.gmra.mxu0 %v421
    %v471 = vpop.f32.mrf.mxu0
    %v472 = vadd.f32 %v303, %v471
    %v473 = vpop.f32.mrf.mxu0
    %v474 = vpop.f32.mrf.mxu0
    %v475 = vadd.f32 %v307, %v474
    %v476 = vpop.f32.mrf.mxu0
    %477 = vmatprep.mubr.bf16.mxu0 0
    %478 = vmatmul.mubr.bf16.gmra.mxu0 %v422
    %v479 = vpop.f32.mrf.mxu0
    %v480 = vadd.f32 %v313, %v479
    %v481 = vpop.f32.mrf.mxu0
    %v482 = vpop.f32.mrf.mxu0
    %v483 = vadd.f32 %v317, %v482
    %v484 = vpop.f32.mrf.mxu0
    %485 = vmatprep.mubr.bf16.mxu0 0
    %486 = vmatmul.mubr.bf16.gmra.mxu0 %v423
    %v487 = vpop.f32.mrf.mxu0
    %v488 = vadd.f32 %v323, %v487
    %v489 = vpop.f32.mrf.mxu0
    %v490 = vpop.f32.mrf.mxu0
    %v491 = vadd.f32 %v327, %v490
    %v492 = vpop.f32.mrf.mxu0
    %493 = vmatprep.mubr.bf16.mxu0 0
    %494 = vmatmul.mubr.bf16.gmra.mxu0 %v424
    %v495 = vpop.f32.mrf.mxu0
    %v496 = vadd.f32 %v333, %v495
    %v497 = vpop.f32.mrf.mxu0
    %v498 = vpop.f32.mrf.mxu0
    %v499 = vadd.f32 %v337, %v498
    %v500 = vpop.f32.mrf.mxu0
    %501 = vmatprep.mubr.bf16.mxu0 0
    %502 = vmatmul.mubr.bf16.gmra.mxu0 %v425
    %v503 = vpop.f32.mrf.mxu0
    %v504 = vadd.f32 %v343, %v503
    %v505 = vpop.f32.mrf.mxu0
    %v506 = vpop.f32.mrf.mxu0
    %v507 = vadd.f32 %v347, %v506
    %v508 = vpop.f32.mrf.mxu0
    %509 = vmatprep.mubr.bf16.mxu0 0
    %510 = vmatmul.mubr.bf16.gmra.mxu0 %v426
    %v511 = vpop.f32.mrf.mxu0
    %v512 = vadd.f32 %v353, %v511
    %v513 = vpop.f32.mrf.mxu0
    %v514 = vpop.f32.mrf.mxu0
    %v515 = vadd.f32 %v357, %v514
    %v516 = vpop.f32.mrf.mxu0
    %517 = vmatprep.mubr.bf16.mxu0 0
    %518 = vmatmul.mubr.bf16.gmra.mxu0 %v427
    %v519 = vpop.f32.mrf.mxu0
    %v520 = vadd.f32 %v363, %v519
    %v521 = vpop.f32.mrf.mxu0
    %v522 = vpop.f32.mrf.mxu0
    %v523 = vadd.f32 %v367, %v522
    %v524 = vpop.f32.mrf.mxu0
    %525 = vmatprep.mubr.bf16.mxu0 0
    %526 = vmatmul.mubr.bf16.gmra.mxu0 %v428
    %v527 = vpop.f32.mrf.mxu0
    %v528 = vadd.f32 %v373, %v527
    %v529 = vpop.f32.mrf.mxu0
    %v530 = vpop.f32.mrf.mxu0
    %v531 = vadd.f32 %v377, %v530
    %v532 = vpop.f32.mrf.mxu0
    %533 = vdwg.mxu0
    %v534 = vmax.f32 %v472, 0.0
    %v535 = vmax.f32 %v475, 0.0
    %v536 = vmax.f32 %v480, 0.0
    %v537 = vmax.f32 %v483, 0.0
    %v538 = vmax.f32 %v488, 0.0
    %v539 = vmax.f32 %v491, 0.0
    %v540 = vmax.f32 %v496, 0.0
    %v541 = vmax.f32 %v499, 0.0
    %v542 = vmax.f32 %v504, 0.0
    %v543 = vmax.f32 %v507, 0.0
    %v544 = vmax.f32 %v512, 0.0
    %v545 = vmax.f32 %v515, 0.0
    %v546 = vmax.f32 %v520, 0.0
    %v547 = vmax.f32 %v523, 0.0
    %v548 = vmax.f32 %v528, 0.0
    %v549 = vmax.f32 %v531, 0.0
    %v550 = vpack.c.bf16 %v535, %v534
    %v551 = vpack.c.bf16 %v537, %v536
    %v552 = vpack.c.bf16 %v539, %v538
    %v553 = vpack.c.bf16 %v541, %v540
    %v554 = vpack.c.bf16 %v543, %v542
    %v555 = vpack.c.bf16 %v545, %v544
    %v556 = vpack.c.bf16 %v547, %v546
    %v557 = vpack.c.bf16 %v549, %v548
    %v558 = vld [vmem:[#allocation8] sm:$0xff]
    %v559 = vld [vmem:[#allocation8 + $0x8] sm:$0xff]
    %v560 = vld [vmem:[#allocation8 + $0x10] sm:$0xff]
    %v561 = vld [vmem:[#allocation8 + $0x18] sm:$0xff]
    %v562 = vld [vmem:[#allocation8 + $0x20] sm:$0xff]
    %v563 = vld [vmem:[#allocation8 + $0x28] sm:$0xff]
    %v564 = vld [vmem:[#allocation8 + $0x30] sm:$0xff]
    %v565 = vld [vmem:[#allocation8 + $0x38] sm:$0xff]
    %v566 = vld [vmem:[#allocation8 + $0x40] sm:$0xff]
    %v567 = vld [vmem:[#allocation8 + $0x48] sm:$0xff]
    %v568 = vld [vmem:[#allocation8 + $0x50] sm:$0xff]
    %v569 = vld [vmem:[#allocation8 + $0x58] sm:$0xff]
    %v570 = vld [vmem:[#allocation8 + $0x60] sm:$0xff]
    %v571 = vld [vmem:[#allocation8 + $0x68] sm:$0xff]
    %v572 = vld [vmem:[#allocation8 + $0x70] sm:$0xff]
    %v573 = vld [vmem:[#allocation8 + $0x78] sm:$0xff]
    %v574 = vld [vmem:[%s5] sm:$0x3]
    %v576 = vlaneseq
    %v577 = vshrl.u32 %v576, 7
    %v578 = vsub.s32 0, %v577
    %v579 = vrot.slane %v574, %v578
    %v580 = vlaneseq
    %v581 = vshrl.u32 %v580, 7
    %v582 = vsub.s32 1, %v581
    %v583 = vrot.slane %v574, %v582
    %v602 = vunpack.c.l.b16 %v558
    %v603 = vunpack.c.h.b16 %v558
    %v604 = vunpack.c.l.b16 %v559
    %v605 = vunpack.c.h.b16 %v559
    %v606 = vunpack.c.l.b16 %v560
    %v607 = vunpack.c.h.b16 %v560
    %v608 = vunpack.c.l.b16 %v561
    %v609 = vunpack.c.h.b16 %v561
    %v610 = vunpack.c.l.b16 %v562
    %v611 = vunpack.c.h.b16 %v562
    %v612 = vunpack.c.l.b16 %v563
    %v613 = vunpack.c.h.b16 %v563
    %v614 = vunpack.c.l.b16 %v564
    %v615 = vunpack.c.h.b16 %v564
    %v616 = vunpack.c.l.b16 %v565
    %v617 = vunpack.c.h.b16 %v565
    %v618 = vunpack.c.l.b16 %v566
    %v619 = vunpack.c.h.b16 %v566
    %v620 = vunpack.c.l.b16 %v567
    %v621 = vunpack.c.h.b16 %v567
    %v622 = vunpack.c.l.b16 %v568
    %v623 = vunpack.c.h.b16 %v568
    %v624 = vunpack.c.l.b16 %v569
    %v625 = vunpack.c.h.b16 %v569
    %v626 = vunpack.c.l.b16 %v570
    %v627 = vunpack.c.h.b16 %v570
    %v628 = vunpack.c.l.b16 %v571
    %v629 = vunpack.c.h.b16 %v571
    %v630 = vunpack.c.l.b16 %v572
    %v631 = vunpack.c.h.b16 %v572
    %v632 = vunpack.c.l.b16 %v573
    %v633 = vunpack.c.h.b16 %v573
    %v634 = vpack.c.b16 %v604, %v602
    %v635 = vpack.c.b16 %v605, %v603
    %v636 = vpack.c.b16 %v608, %v606
    %v637 = vpack.c.b16 %v609, %v607
    %v638 = vpack.c.b16 %v612, %v610
    %v639 = vpack.c.b16 %v613, %v611
    %v640 = vpack.c.b16 %v616, %v614
    %v641 = vpack.c.b16 %v617, %v615
    %v642 = vpack.c.b16 %v620, %v618
    %v643 = vpack.c.b16 %v621, %v619
    %v644 = vpack.c.b16 %v624, %v622
    %v645 = vpack.c.b16 %v625, %v623
    %v646 = vpack.c.b16 %v628, %v626
    %v647 = vpack.c.b16 %v629, %v627
    %v648 = vpack.c.b16 %v632, %v630
    %v649 = vpack.c.b16 %v633, %v631
    %666 = vmatprep.subr.bf16.mxu0 %v649
    %667 = vmatpush1.bf16.msra.mxu0 %v648
    %668 = vmatprep.subr.bf16.mxu0 %v647
    %669 = vmatpush1.bf16.msra.mxu0 %v646
    %670 = vmatprep.subr.bf16.mxu0 %v645
    %671 = vmatpush1.bf16.msra.mxu0 %v644
    %672 = vmatprep.subr.bf16.mxu0 %v643
    %673 = vmatpush1.bf16.msra.mxu0 %v642
    %674 = vmatprep.subr.bf16.mxu0 %v641
    %675 = vmatpush1.bf16.msra.mxu0 %v640
    %676 = vmatprep.subr.bf16.mxu0 %v639
    %677 = vmatpush1.bf16.msra.mxu0 %v638
    %678 = vmatprep.subr.bf16.mxu0 %v637
    %679 = vmatpush1.bf16.msra.mxu0 %v636
    %680 = vmatprep.subr.bf16.mxu0 %v635
    %681 = vmatpush1.bf16.msra.mxu0 %v634
    %682 = vmatprep.subr.bf16.mxu0 0
    %683 = vmatpush2.bf16.msra.mxu0 0
    %684 = vmatprep.subr.bf16.mxu0 0
    %685 = vmatpush2.bf16.msra.mxu0 0
    %686 = vmatprep.subr.bf16.mxu0 0
    %687 = vmatpush2.bf16.msra.mxu0 0
    %688 = vmatprep.subr.bf16.mxu0 0
    %689 = vmatpush2.bf16.msra.mxu0 0
    %690 = vmatprep.subr.bf16.mxu0 0
    %691 = vmatpush2.bf16.msra.mxu0 0
    %692 = vmatprep.subr.bf16.mxu0 0
    %693 = vmatpush2.bf16.msra.mxu0 0
    %694 = vmatprep.subr.bf16.mxu0 0
    %695 = vmatpush2.bf16.msra.mxu0 0
    %696 = vmatprep.subr.bf16.mxu0 0
    %697 = vmatpush2.bf16.msra.mxu0 0
    %698 = vmatprep.mubr.bf16.mxu0 0
    %699 = vmatmul.mubr.bf16.gmra.mxu0 %v550
    %v700 = vpop.f32.mrf.mxu0
    %v701 = vadd.f32 %v579, %v700
    %v702 = vpop.f32.mrf.mxu0
    %v703 = vadd.f32 %v583, %v702
    %v704 = vpop.f32.mrf.mxu0
    %v705 = vadd.f32 %v579, %v704
    %v706 = vpop.f32.mrf.mxu0
    %v707 = vadd.f32 %v583, %v706
    %708 = vmatprep.mubr.bf16.mxu0 0
    %709 = vmatmul.mubr.bf16.gmra.mxu0 %v551
    %v710 = vpop.f32.mrf.mxu0
    %v711 = vadd.f32 %v579, %v710
    %v712 = vpop.f32.mrf.mxu0
    %v713 = vadd.f32 %v583, %v712
    %v714 = vpop.f32.mrf.mxu0
    %v715 = vadd.f32 %v579, %v714
    %v716 = vpop.f32.mrf.mxu0
    %v717 = vadd.f32 %v583, %v716
    %718 = vmatprep.mubr.bf16.mxu0 0
    %719 = vmatmul.mubr.bf16.gmra.mxu0 %v552
    %v720 = vpop.f32.mrf.mxu0
    %v721 = vadd.f32 %v579, %v720
    %v722 = vpop.f32.mrf.mxu0
    %v723 = vadd.f32 %v583, %v722
    %v724 = vpop.f32.mrf.mxu0
    %v725 = vadd.f32 %v579, %v724
    %v726 = vpop.f32.mrf.mxu0
    %v727 = vadd.f32 %v583, %v726
    %728 = vmatprep.mubr.bf16.mxu0 0
    %729 = vmatmul.mubr.bf16.gmra.mxu0 %v553
    %v730 = vpop.f32.mrf.mxu0
    %v731 = vadd.f32 %v579, %v730
    %v732 = vpop.f32.mrf.mxu0
    %v733 = vadd.f32 %v583, %v732
    %v734 = vpop.f32.mrf.mxu0
    %v735 = vadd.f32 %v579, %v734
    %v736 = vpop.f32.mrf.mxu0
    %v737 = vadd.f32 %v583, %v736
    %738 = vmatprep.mubr.bf16.mxu0 0
    %739 = vmatmul.mubr.bf16.gmra.mxu0 %v554
    %v740 = vpop.f32.mrf.mxu0
    %v741 = vadd.f32 %v579, %v740
    %v742 = vpop.f32.mrf.mxu0
    %v743 = vadd.f32 %v583, %v742
    %v744 = vpop.f32.mrf.mxu0
    %v745 = vadd.f32 %v579, %v744
    %v746 = vpop.f32.mrf.mxu0
    %v747 = vadd.f32 %v583, %v746
    %748 = vmatprep.mubr.bf16.mxu0 0
    %749 = vmatmul.mubr.bf16.gmra.mxu0 %v555
    %v750 = vpop.f32.mrf.mxu0
    %v751 = vadd.f32 %v579, %v750
    %v752 = vpop.f32.mrf.mxu0
    %v753 = vadd.f32 %v583, %v752
    %v754 = vpop.f32.mrf.mxu0
    %v755 = vadd.f32 %v579, %v754
    %v756 = vpop.f32.mrf.mxu0
    %v757 = vadd.f32 %v583, %v756
    %758 = vmatprep.mubr.bf16.mxu0 0
    %759 = vmatmul.mubr.bf16.gmra.mxu0 %v556
    %v760 = vpop.f32.mrf.mxu0
    %v761 = vadd.f32 %v579, %v760
    %v762 = vpop.f32.mrf.mxu0
    %v763 = vadd.f32 %v583, %v762
    %v764 = vpop.f32.mrf.mxu0
    %v765 = vadd.f32 %v579, %v764
    %v766 = vpop.f32.mrf.mxu0
    %v767 = vadd.f32 %v583, %v766
    %768 = vmatprep.mubr.bf16.mxu0 0
    %769 = vmatmul.mubr.bf16.gmra.mxu0 %v557
    %v770 = vpop.f32.mrf.mxu0
    %v771 = vadd.f32 %v579, %v770
    %v772 = vpop.f32.mrf.mxu0
    %v773 = vadd.f32 %v583, %v772
    %v774 = vpop.f32.mrf.mxu0
    %v775 = vadd.f32 %v579, %v774
    %v776 = vpop.f32.mrf.mxu0
    %v777 = vadd.f32 %v583, %v776
    %778 = vdwg.mxu0
    %v779 = vpack.c.bf16 %v707, %v703
    %v780 = vpack.c.bf16 %v717, %v713
    %v781 = vpack.c.bf16 %v727, %v723
    %v782 = vpack.c.bf16 %v737, %v733
    %v783 = vpack.c.bf16 %v747, %v743
    %v784 = vpack.c.bf16 %v757, %v753
    %v785 = vpack.c.bf16 %v767, %v763
    %v786 = vpack.c.bf16 %v777, %v773
    %787 = vmatprep.subr.bf16.mxu0 0
    %788 = vmatpush1.bf16.msra.mxu0 %v786
    %789 = vmatprep.subr.bf16.mxu0 0
    %790 = vmatpush1.bf16.msra.mxu0 %v785
    %791 = vmatprep.subr.bf16.mxu0 0
    %792 = vmatpush1.bf16.msra.mxu0 %v784
    %793 = vmatprep.subr.bf16.mxu0 0
    %794 = vmatpush1.bf16.msra.mxu0 %v783
    %795 = vmatprep.subr.bf16.mxu0 0
    %796 = vmatpush1.bf16.msra.mxu0 %v782
    %797 = vmatprep.subr.bf16.mxu0 0
    %798 = vmatpush1.bf16.msra.mxu0 %v781
    %799 = vmatprep.subr.bf16.mxu0 0
    %800 = vmatpush1.bf16.msra.mxu0 %v780
    %801 = vmatprep.subr.bf16.mxu0 0
    %802 = vmatpush1.bf16.msra.mxu0 %v779
    %803 = vmatprep.subr.bf16.mxu0 0
    %804 = vmatpush2.bf16.msra.mxu0 0
    %805 = vmatprep.subr.bf16.mxu0 0
    %806 = vmatpush2.bf16.msra.mxu0 0
    %807 = vmatprep.subr.bf16.mxu0 0
    %808 = vmatpush2.bf16.msra.mxu0 0
    %809 = vmatprep.subr.bf16.mxu0 0
    %810 = vmatpush2.bf16.msra.mxu0 0
    %811 = vmatprep.subr.bf16.mxu0 0
    %812 = vmatpush2.bf16.msra.mxu0 0
    %813 = vmatprep.subr.bf16.mxu0 0
    %814 = vmatpush2.bf16.msra.mxu0 0
    %815 = vmatprep.subr.bf16.mxu0 0
    %816 = vmatpush2.bf16.msra.mxu0 0
    %817 = vmatprep.subr.bf16.mxu0 0
    %818 = vmatpush2.bf16.msra.mxu0 0
    %819 = vmatprep.mubr.bf16.mxu0 0
    %820 = vmatmul.mubr.bf16.gmra.mxu0 %v421
    %v821 = vpop.f32.mrf.mxu0
    %v822 = vadd.f32 %v701, %v821
    %v823 = vpop.f32.mrf.mxu0
    %v824 = vpop.f32.mrf.mxu0
    %v825 = vadd.f32 %v705, %v824
    %v826 = vpop.f32.mrf.mxu0
    %827 = vmatprep.mubr.bf16.mxu0 0
    %828 = vmatmul.mubr.bf16.gmra.mxu0 %v422
    %v829 = vpop.f32.mrf.mxu0
    %v830 = vadd.f32 %v711, %v829
    %v831 = vpop.f32.mrf.mxu0
    %v832 = vpop.f32.mrf.mxu0
    %v833 = vadd.f32 %v715, %v832
    %v834 = vpop.f32.mrf.mxu0
    %835 = vmatprep.mubr.bf16.mxu0 0
    %836 = vmatmul.mubr.bf16.gmra.mxu0 %v423
    %v837 = vpop.f32.mrf.mxu0
    %v838 = vadd.f32 %v721, %v837
    %v839 = vpop.f32.mrf.mxu0
    %v840 = vpop.f32.mrf.mxu0
    %v841 = vadd.f32 %v725, %v840
    %v842 = vpop.f32.mrf.mxu0
    %843 = vmatprep.mubr.bf16.mxu0 0
    %844 = vmatmul.mubr.bf16.gmra.mxu0 %v424
    %v845 = vpop.f32.mrf.mxu0
    %v846 = vadd.f32 %v731, %v845
    %v847 = vpop.f32.mrf.mxu0
    %v848 = vpop.f32.mrf.mxu0
    %v849 = vadd.f32 %v735, %v848
    %v850 = vpop.f32.mrf.mxu0
    %851 = vmatprep.mubr.bf16.mxu0 0
    %852 = vmatmul.mubr.bf16.gmra.mxu0 %v425
    %v853 = vpop.f32.mrf.mxu0
    %v854 = vadd.f32 %v741, %v853
    %v855 = vpop.f32.mrf.mxu0
    %v856 = vpop.f32.mrf.mxu0
    %v857 = vadd.f32 %v745, %v856
    %v858 = vpop.f32.mrf.mxu0
    %859 = vmatprep.mubr.bf16.mxu0 0
    %860 = vmatmul.mubr.bf16.gmra.mxu0 %v426
    %v861 = vpop.f32.mrf.mxu0
    %v862 = vadd.f32 %v751, %v861
    %v863 = vpop.f32.mrf.mxu0
    %v864 = vpop.f32.mrf.mxu0
    %v865 = vadd.f32 %v755, %v864
    %v866 = vpop.f32.mrf.mxu0
    %867 = vmatprep.mubr.bf16.mxu0 0
    %868 = vmatmul.mubr.bf16.gmra.mxu0 %v427
    %v869 = vpop.f32.mrf.mxu0
    %v870 = vadd.f32 %v761, %v869
    %v871 = vpop.f32.mrf.mxu0
    %v872 = vpop.f32.mrf.mxu0
    %v873 = vadd.f32 %v765, %v872
    %v874 = vpop.f32.mrf.mxu0
    %875 = vmatprep.mubr.bf16.mxu0 0
    %876 = vmatmul.mubr.bf16.gmra.mxu0 %v428
    %v877 = vpop.f32.mrf.mxu0
    %v878 = vadd.f32 %v771, %v877
    %v879 = vpop.f32.mrf.mxu0
    %v880 = vpop.f32.mrf.mxu0
    %v881 = vadd.f32 %v775, %v880
    %v882 = vpop.f32.mrf.mxu0
    %883 = vdwg.mxu0
    %v884 = vlaneseq
    %v885 = vand.u32 %v884, 127
    %vm886 = vcmp.lt.s32.totalorder %v885, 16
    %v887 = vsel %vm886, %v822, -1e+30
    %v888 = vsel %vm886, %v825, -1e+30
    %v889 = vsel %vm886, %v830, -1e+30
    %v890 = vsel %vm886, %v833, -1e+30
    %v891 = vsel %vm886, %v838, -1e+30
    %v892 = vsel %vm886, %v841, -1e+30
    %v893 = vsel %vm886, %v846, -1e+30
    %v894 = vsel %vm886, %v849, -1e+30
    %v895 = vsel %vm886, %v854, -1e+30
    %v896 = vsel %vm886, %v857, -1e+30
    %v897 = vsel %vm886, %v862, -1e+30
    %v898 = vsel %vm886, %v865, -1e+30
    %v899 = vsel %vm886, %v870, -1e+30
    %v900 = vsel %vm886, %v873, -1e+30
    %v901 = vsel %vm886, %v878, -1e+30
    %v902 = vsel %vm886, %v881, -1e+30
    %903 = vmax.xlane.f32.xlu0 %v887
    %v904 = vpop.xlane.xlu0 %903
    %905 = vmax.xlane.f32.xlu0 %v888
    %v906 = vpop.xlane.xlu0 %905
    %907 = vmax.xlane.f32.xlu0 %v889
    %v908 = vpop.xlane.xlu0 %907
    %909 = vmax.xlane.f32.xlu0 %v890
    %v910 = vpop.xlane.xlu0 %909
    %911 = vmax.xlane.f32.xlu0 %v891
    %v912 = vpop.xlane.xlu0 %911
    %913 = vmax.xlane.f32.xlu0 %v892
    %v914 = vpop.xlane.xlu0 %913
    %915 = vmax.xlane.f32.xlu0 %v893
    %v916 = vpop.xlane.xlu0 %915
    %917 = vmax.xlane.f32.xlu0 %v894
    %v918 = vpop.xlane.xlu0 %917
    %919 = vmax.xlane.f32.xlu0 %v895
    %v920 = vpop.xlane.xlu0 %919
    %921 = vmax.xlane.f32.xlu0 %v896
    %v922 = vpop.xlane.xlu0 %921
    %923 = vmax.xlane.f32.xlu0 %v897
    %v924 = vpop.xlane.xlu0 %923
    %925 = vmax.xlane.f32.xlu0 %v898
    %v926 = vpop.xlane.xlu0 %925
    %927 = vmax.xlane.f32.xlu0 %v899
    %v928 = vpop.xlane.xlu0 %927
    %929 = vmax.xlane.f32.xlu0 %v900
    %v930 = vpop.xlane.xlu0 %929
    %931 = vmax.xlane.f32.xlu0 %v901
    %v932 = vpop.xlane.xlu0 %931
    %933 = vmax.xlane.f32.xlu0 %v902
    %v934 = vpop.xlane.xlu0 %933
    %v935 = vsub.f32 %v887, %v904
    %v936 = vsub.f32 %v888, %v906
    %v937 = vsub.f32 %v889, %v908
    %v938 = vsub.f32 %v890, %v910
    %v939 = vsub.f32 %v891, %v912
    %v940 = vsub.f32 %v892, %v914
    %v941 = vsub.f32 %v893, %v916
    %v942 = vsub.f32 %v894, %v918
    %v943 = vsub.f32 %v895, %v920
    %v944 = vsub.f32 %v896, %v922
    %v945 = vsub.f32 %v897, %v924
    %v946 = vsub.f32 %v898, %v926
    %v947 = vsub.f32 %v899, %v928
    %v948 = vsub.f32 %v900, %v930
    %v949 = vsub.f32 %v901, %v932
    %v950 = vsub.f32 %v902, %v934
    %v951 = vmul.f32 %v935, 1.442695
    %v952 = vpow.pop %v951
    %v953 = vmul.f32 %v936, 1.442695
    %v954 = vpow.pop %v953
    %v955 = vmul.f32 %v937, 1.442695
    %v956 = vpow.pop %v955
    %v957 = vmul.f32 %v938, 1.442695
    %v958 = vpow.pop %v957
    %v959 = vmul.f32 %v939, 1.442695
    %v960 = vpow.pop %v959
    %v961 = vmul.f32 %v940, 1.442695
    %v962 = vpow.pop %v961
    %v963 = vmul.f32 %v941, 1.442695
    %v964 = vpow.pop %v963
    %v965 = vmul.f32 %v942, 1.442695
    %v966 = vpow.pop %v965
    %v967 = vmul.f32 %v943, 1.442695
    %v968 = vpow.pop %v967
    %v969 = vmul.f32 %v944, 1.442695
    %v970 = vpow.pop %v969
    %v971 = vmul.f32 %v945, 1.442695
    %v972 = vpow.pop %v971
    %v973 = vmul.f32 %v946, 1.442695
    %v974 = vpow.pop %v973
    %v975 = vmul.f32 %v947, 1.442695
    %v976 = vpow.pop %v975
    %v977 = vmul.f32 %v948, 1.442695
    %v978 = vpow.pop %v977
    %v979 = vmul.f32 %v949, 1.442695
    %v980 = vpow.pop %v979
    %v981 = vmul.f32 %v950, 1.442695
    %v982 = vpow.pop %v981
    %983 = vadd.xlane.f32.xlu0 %v952
    %v984 = vpop.xlane.xlu0 %983
    %985 = vadd.xlane.f32.xlu0 %v954
    %v986 = vpop.xlane.xlu0 %985
    %987 = vadd.xlane.f32.xlu0 %v956
    %v988 = vpop.xlane.xlu0 %987
    %989 = vadd.xlane.f32.xlu0 %v958
    %v990 = vpop.xlane.xlu0 %989
    %991 = vadd.xlane.f32.xlu0 %v960
    %v992 = vpop.xlane.xlu0 %991
    %993 = vadd.xlane.f32.xlu0 %v962
    %v994 = vpop.xlane.xlu0 %993
    %995 = vadd.xlane.f32.xlu0 %v964
    %v996 = vpop.xlane.xlu0 %995
    %997 = vadd.xlane.f32.xlu0 %v966
    %v998 = vpop.xlane.xlu0 %997
    %999 = vadd.xlane.f32.xlu0 %v968
    %v1000 = vpop.xlane.xlu0 %999
    %1001 = vadd.xlane.f32.xlu0 %v970
    %v1002 = vpop.xlane.xlu0 %1001
    %1003 = vadd.xlane.f32.xlu0 %v972
    %v1004 = vpop.xlane.xlu0 %1003
    %1005 = vadd.xlane.f32.xlu0 %v974
    %v1006 = vpop.xlane.xlu0 %1005
    %1007 = vadd.xlane.f32.xlu0 %v976
    %v1008 = vpop.xlane.xlu0 %1007
    %1009 = vadd.xlane.f32.xlu0 %v978
    %v1010 = vpop.xlane.xlu0 %1009
    %1011 = vadd.xlane.f32.xlu0 %v980
    %v1012 = vpop.xlane.xlu0 %1011
    %1013 = vadd.xlane.f32.xlu0 %v982
    %v1014 = vpop.xlane.xlu0 %1013
    %v1015 = vlog2.pop %v984
    %v1016 = vmul.f32 %v1015, 0.6931472
    %v1017 = vlog2.pop %v986
    %v1018 = vmul.f32 %v1017, 0.6931472
    %v1019 = vlog2.pop %v988
    %v1020 = vmul.f32 %v1019, 0.6931472
    %v1021 = vlog2.pop %v990
    %v1022 = vmul.f32 %v1021, 0.6931472
    %v1023 = vlog2.pop %v992
    %v1024 = vmul.f32 %v1023, 0.6931472
    %v1025 = vlog2.pop %v994
    %v1026 = vmul.f32 %v1025, 0.6931472
    %v1027 = vlog2.pop %v996
    %v1028 = vmul.f32 %v1027, 0.6931472
    %v1029 = vlog2.pop %v998
    %v1030 = vmul.f32 %v1029, 0.6931472
    %v1031 = vlog2.pop %v1000
    %v1032 = vmul.f32 %v1031, 0.6931472
    %v1033 = vlog2.pop %v1002
    %v1034 = vmul.f32 %v1033, 0.6931472
    %v1035 = vlog2.pop %v1004
    %v1036 = vmul.f32 %v1035, 0.6931472
    %v1037 = vlog2.pop %v1006
    %v1038 = vmul.f32 %v1037, 0.6931472
    %v1039 = vlog2.pop %v1008
    %v1040 = vmul.f32 %v1039, 0.6931472
    %v1041 = vlog2.pop %v1010
    %v1042 = vmul.f32 %v1041, 0.6931472
    %v1043 = vlog2.pop %v1012
    %v1044 = vmul.f32 %v1043, 0.6931472
    %v1045 = vlog2.pop %v1014
    %v1046 = vmul.f32 %v1045, 0.6931472
    %v1047 = vsub.f32 %v822, %v904
    %v1048 = vsub.f32 %v825, %v906
    %v1049 = vsub.f32 %v830, %v908
    %v1050 = vsub.f32 %v833, %v910
    %v1051 = vsub.f32 %v838, %v912
    %v1052 = vsub.f32 %v841, %v914
    %v1053 = vsub.f32 %v846, %v916
    %v1054 = vsub.f32 %v849, %v918
    %v1055 = vsub.f32 %v854, %v920
    %v1056 = vsub.f32 %v857, %v922
    %v1057 = vsub.f32 %v862, %v924
    %v1058 = vsub.f32 %v865, %v926
    %v1059 = vsub.f32 %v870, %v928
    %v1060 = vsub.f32 %v873, %v930
    %v1061 = vsub.f32 %v878, %v932
    %v1062 = vsub.f32 %v881, %v934
    %v1063 = vsub.f32 %v1047, %v1016
    %v1064 = vsub.f32 %v1048, %v1018
    %v1065 = vsub.f32 %v1049, %v1020
    %v1066 = vsub.f32 %v1050, %v1022
    %v1067 = vsub.f32 %v1051, %v1024
    %v1068 = vsub.f32 %v1052, %v1026
    %v1069 = vsub.f32 %v1053, %v1028
    %v1070 = vsub.f32 %v1054, %v1030
    %v1071 = vsub.f32 %v1055, %v1032
    %v1072 = vsub.f32 %v1056, %v1034
    %v1073 = vsub.f32 %v1057, %v1036
    %v1074 = vsub.f32 %v1058, %v1038
    %v1075 = vsub.f32 %v1059, %v1040
    %v1076 = vsub.f32 %v1060, %v1042
    %v1077 = vsub.f32 %v1061, %v1044
    %v1078 = vsub.f32 %v1062, %v1046
    %1079 = vst [vmem:[#allocation10] sm:$0xff] %v1063
    %1080 = vst [vmem:[#allocation10 + $0x8] sm:$0xff] %v1064
    %1081 = vst [vmem:[#allocation10 + $0x10] sm:$0xff] %v1065
    %1082 = vst [vmem:[#allocation10 + $0x18] sm:$0xff] %v1066
    %1083 = vst [vmem:[#allocation10 + $0x20] sm:$0xff] %v1067
    %1084 = vst [vmem:[#allocation10 + $0x28] sm:$0xff] %v1068
    %1085 = vst [vmem:[#allocation10 + $0x30] sm:$0xff] %v1069
    %1086 = vst [vmem:[#allocation10 + $0x38] sm:$0xff] %v1070
    %1087 = vst [vmem:[#allocation10 + $0x40] sm:$0xff] %v1071
    %1088 = vst [vmem:[#allocation10 + $0x48] sm:$0xff] %v1072
    %1089 = vst [vmem:[#allocation10 + $0x50] sm:$0xff] %v1073
    %1090 = vst [vmem:[#allocation10 + $0x58] sm:$0xff] %v1074
    %1091 = vst [vmem:[#allocation10 + $0x60] sm:$0xff] %v1075
    %1092 = vst [vmem:[#allocation10 + $0x68] sm:$0xff] %v1076
    %1093 = vst [vmem:[#allocation10 + $0x70] sm:$0xff] %v1077
    %1094 = vst [vmem:[#allocation10 + $0x78] sm:$0xff] %v1078
    // Predicated region
    $region42: #{tpu_custom_call.1} parent=1 // pred_check
      _
    $region43: #{tpu_custom_call.1} parent=1 // pred_check_branch
      %1096 = sbr.rel (0) target = $region45
    $region44: #{tpu_custom_call.1} parent=1 // pred_region
      %s1098 = ssub.s32 2048, 2048
      %1099 = vsyncadd [#allocation4], %s1098
      %s1100 = sshll.u32 [#allocation10], 4
      %s1101 = int_to_ptr.vmem [resolvable:$true] %s1100
      %1106 = dma.vmem_to_hbm [thread:$0]  %s1101, 2048, %s6, [#allocation4], 128, 128, 8
    $region45: #{tpu_custom_call.1} parent=1 // pred_fallthru
      _
    // Predicated region
    $region46: #{tpu_custom_call.1} parent=1 // pred_check
      _
    $region47: #{tpu_custom_call.1} parent=1 // pred_check_branch
      %1108 = sbr.rel (0) target = $region49
    $region48: #{tpu_custom_call.1} parent=1 // pred_region
      %1109 = dma.done [#allocation4], 2048
    $region49: #{tpu_custom_call.1} parent=1 // pred_fallthru
      _
    %1110 = vsyncpa [#allocation3], 1
    %1111 = vsyncpa [#allocation6], 1
    %1112 = vsyncpa [#allocation9], 1
    %1113 = vsyncpa [#allocation4], 1

</llo_original>
